<compile_context>
chip_gen: v6e
topology: v6e:2x2x1
jax: 0.10.0
libtpu: 0.0.40
codegen_flags: <defaults>
</compile_context>

<pallas_src>
import math

import jax
import jax.numpy as jnp
import numpy as np
from jax.experimental import pallas as pl
from jax.experimental.pallas import tpu as pltpu


def _sigmoid(x):
    # tanh-based sigmoid: one EUP op (tanh) + cheap VPU ops; avoids the
    # exp + full-precision divide of 1/(1+exp(-x)).
    return 0.5 * jnp.tanh(0.5 * x) + 0.5


def _make_kernel(num_weights, is_final, max_depth):
    """Fused kernel: chained 1x1-conv matmuls + ELU, head conv, then
    sigmoid / trig post-processing and L2 normalization of the normal."""

    def kernel(*refs):
        x_ref = refs[0]
        w_refs = refs[1:1 + num_weights]
        o_ref = refs[1 + num_weights]

        # (C, tile): channels on sublanes, pixels lane-dense.
        # f32 streamed from HBM; cast to bf16 in-register for the MXU.
        h = x_ref[...].astype(jnp.bfloat16)

        # reduc: Conv2d(1x1, bias=False) + ELU chain.  1x1 conv == matmul over C.
        # Every dot is bf16 x bf16 on the MXU with f32 accumulation; the ELU
        # (including exp) runs in bf16 to use the bf16 EUP path on v6e/v7x.
        for w_ref in w_refs[:-1]:
            z = jnp.dot(w_ref[...], h, preferred_element_type=jnp.float32)
            zb = z.astype(jnp.bfloat16)
            # ELU(alpha=1.0).
            # TODO(synk): jnp.expm1 would save one VPU subtract, but its Mosaic
            # lowering isn't guaranteed across jax versions; keep exp(z)-1.
            h = jnp.where(zb > 0, zb, jnp.exp(zb) - 1.0)

        # head conv (no bias): (out_head, tile), f32.
        p = jnp.dot(w_refs[-1][...], h, preferred_element_type=jnp.float32)

        if is_final:
            # 'final' branch: Sigmoid, 1 output channel.
            o_ref[...] = _sigmoid(p).astype(o_ref.dtype)
        else:
            # 'plane_params' branch: 3 channels -> (n1, n2, n3, dist).
            sig = _sigmoid(p)                                       # (3, tile) f32

            # One dense (3, tile) scale by the per-row column
            # [pi/3, 2*pi, max_depth].  Built via iota+where so it lowers as
            # splat constants (no dense vector constant needed).
            row = jax.lax.broadcasted_iota(jnp.int32, (3, 1), 0)
            scale_col = jnp.where(
                row == 0, math.pi / 3.0,
                jnp.where(row == 1, 2.0 * math.pi, max_depth)
            ).astype(jnp.float32)
            scaled = sig * scale_col                                # [theta; phi; dist]

            # sin/cos on the stacked (2, tile) [theta; phi] block (2 EUP calls
            # instead of 4 sparse (1, tile) ones).
            tp = scaled[0:2, :]
            s_tp = jnp.sin(tp)                                      # [sin th; sin phi]
            c_tp = jnp.cos(tp)                                      # [cos th; cos phi]

            n1 = s_tp[0:1, :] * c_tp[1:2, :]
            n2 = s_tp[0:1, :] * s_tp[1:2, :]
            n3 = c_tp[0:1, :]

            # F.normalize(p=2, dim=1) with eps=1e-12:
            #   1/max(norm, 1e-12) == rsqrt(max(norm^2, 1e-24))  -> EUP slot.
            inv = jax.lax.rsqrt(jnp.maximum(n1 * n1 + n2 * n2 + n3 * n3, 1e-24))

            # Direct row stores (no sublane concatenate / relayout).
            o_ref[0:1, :] = (n1 * inv).astype(o_ref.dtype)
            o_ref[1:2, :] = (n2 * inv).astype(o_ref.dtype)
            o_ref[2:3, :] = (n3 * inv).astype(o_ref.dtype)
            o_ref[3:4, :] = scaled[2:3, :].astype(o_ref.dtype)

    return kernel


def _pick_tile(hw_pad, batch, target=2048):
    """Pick a lane-tile: a multiple of 128 that divides hw_pad, capped at
    `target`, preferring enough total grid steps (>= ~8) to keep the pipeline
    and both v7x TensorCores busy."""
    cands = [t for t in range(128, min(target, hw_pad) + 1, 128) if hw_pad % t == 0]
    for t in sorted(cands, reverse=True):
        if batch * (hw_pad // t) >= 8:
            return t
    # Tiny problem: maximize grid depth with the smallest candidate.
    return cands[0]


def init_weights(key, in_channel, is_final):
    """Deterministic synthetic weights matching the module's __init__ shapes.
    PyTorch Conv2d(1x1) weight (out, in, 1, 1) is stored here as (out, in).
    Weights are pre-rounded to bf16 values (the kernel's MXU dtype) so the
    f32 reference sees exactly the same weights the kernel consumes."""
    ws = []
    ic = in_channel
    oc = in_channel // 2
    while oc >= 8:
        key, sub = jax.random.split(key)
        w = jax.random.normal(sub, (oc, ic), jnp.float32) / np.sqrt(ic)
        ws.append(w.astype(jnp.bfloat16).astype(jnp.float32))
        ic = oc
        oc = oc // 2
    key, sub = jax.random.split(key)
    head_out = 1 if is_final else 3
    w = jax.random.normal(sub, (head_out, ic), jnp.float32) / np.sqrt(ic)
    ws.append(w.astype(jnp.bfloat16).astype(jnp.float32))
    return ws


def predict_plane_forward(feature, weights, *, is_final, max_depth,
                          tile_target=2048, out_dtype=jnp.float32):
    """feature: (B, C, H, W) float32 (NCHW, like the PyTorch module).
    Returns (B, 4, H, W) (or (B, 1, H, W) if is_final).
    Pass out_dtype=jnp.bfloat16 to halve output write traffic if downstream
    consumers accept it."""
    B, C, H, W = feature.shape
    HW = H * W
    out_ch = 1 if is_final else 4

    # Lane-align the pixel count; only pad if H*W isn't already 128-aligned.
    HW_pad = pl.cdiv(HW, 128) * 128
    tile = _pick_tile(HW_pad, B, tile_target)
    n_tiles = HW_pad // tile

    # NCHW -> (B, C, H*W): zero-copy reshape; pixels land on the lane axis.
    # NO dtype cast here — the kernel reads f32 and casts to bf16 in-register.
    x = feature.reshape(B, C, HW)
    if HW_pad != HW:
        # TODO(synk): replace this (rare) pad pass with an in-kernel masked
        # tail store to avoid the extra HBM read+write.
        x = jnp.pad(x, ((0, 0), (0, 0), (0, HW_pad - HW)))

    # Weights are tiny (<= a few KiB); casting them is negligible traffic.
    ws = [w.astype(jnp.bfloat16) for w in weights]

    kernel = _make_kernel(len(ws), is_final, float(max_depth))

    in_specs = [pl.BlockSpec((pl.Squeezed(), C, tile), lambda b, i: (b, 0, i))]
    for w in ws:
        in_specs.append(pl.BlockSpec(w.shape, lambda b, i: (0, 0)))  # resident weight

    out = pl.pallas_call(
        kernel,
        out_shape=jax.ShapeDtypeStruct((B, out_ch, HW_pad), out_dtype),
        grid=(B, n_tiles),
        in_specs=in_specs,
        out_specs=pl.BlockSpec((pl.Squeezed(), out_ch, tile), lambda b, i: (b, 0, i)),
        compiler_params=pltpu.CompilerParams(
            dimension_semantics=("parallel", "parallel")),
    )(x, *ws)
    # TODO(synk): if profiling on v5e still shows exposed DMA, add
    # pipeline_mode=pl.Buffered(3) on the pixel-matrix BlockSpec only.

    if HW_pad != HW:
        out = out[:, :, :HW]
    # (B, out_ch, H*W) -> (B, out_ch, H, W): zero-copy reshape.
    return out.reshape(B, out_ch, H, W)


def reference_forward(feature, weights, *, is_final, max_depth):
    """Pure-JAX f32 reference replicating the PyTorch forward semantics."""
    h = feature.astype(jnp.float32)
    for w in weights[:-1]:
        h = jnp.einsum('oc,bchw->bohw', w.astype(jnp.float32), h)
        h = jnp.where(h > 0.0, h, jnp.exp(h) - 1.0)
    p = jnp.einsum('oc,bchw->bohw', weights[-1].astype(jnp.float32), h)
    if is_final:
        return jax.nn.sigmoid(p)
    sig = jax.nn.sigmoid(p)
    theta = sig[:, 0] * math.pi / 3.0
    phi = sig[:, 1] * math.pi * 2.0
    dist = sig[:, 2] * max_depth
    n1 = jnp.sin(theta) * jnp.cos(phi)
    n2 = jnp.sin(theta) * jnp.sin(phi)
    n3 = jnp.cos(theta)
    norm = jnp.maximum(jnp.sqrt(n1 * n1 + n2 * n2 + n3 * n3), 1e-12)
    return jnp.stack([n1 / norm, n2 / norm, n3 / norm, dist], axis=1)


if __name__ == "__main__":
    key = jax.random.PRNGKey(0)
    k_feat, k_w = jax.random.split(key)

    B, C, H, W = 2, 32, 16, 16
    max_depth = 10.0
    # Pre-round the feature to bf16 values so the kernel's in-register bf16
    # cast is lossless and the f32 reference consumes identical inputs.
    feature = jax.random.normal(k_feat, (B, C, H, W), jnp.float32)
    feature = feature.astype(jnp.bfloat16).astype(jnp.float32)

    # Main path: is_final=False  (conv chain 32->16->8, head 8->3, plane params)
    weights = init_weights(k_w, C, is_final=False)
    out = predict_plane_forward(feature, weights, is_final=False, max_depth=max_depth)
    out = jax.block_until_ready(out)
    ref = reference_forward(feature, weights, is_final=False, max_depth=max_depth)
    assert out.shape == (B, 4, H, W)
    # Tolerance reflects bf16 activations through the whole dot/ELU chain
    # (reference stays f32 with bf16-rounded inputs).
    np.testing.assert_allclose(np.asarray(out), np.asarray(ref), rtol=2e-2, atol=2e-2)

    # Also exercise is_final=True (head 8->1 + Sigmoid)
    weights_f = init_weights(k_w, C, is_final=True)
    out_f = predict_plane_forward(feature, weights_f, is_final=True, max_depth=max_depth)
    out_f = jax.block_until_ready(out_f)
    ref_f = reference_forward(feature, weights_f, is_final=True, max_depth=max_depth)
    assert out_f.shape == (B, 1, H, W)
    np.testing.assert_allclose(np.asarray(out_f), np.asarray(ref_f), rtol=2e-2, atol=2e-2)

    print("KERNEL_OK")
</pallas_src>

<mosaic_0001>
module attributes {stable_mosaic.version = 11 : i64} {
  func.func @kernel(%arg0: i32, %arg1: i32, %arg2: memref<1x32x128xf32, #tpu.memory_space<vmem>>, %arg3: memref<16x32xbf16, #tpu.memory_space<vmem>>, %arg4: memref<8x16xbf16, #tpu.memory_space<vmem>>, %arg5: memref<3x8xbf16, #tpu.memory_space<vmem>>, %arg6: memref<1x4x128xf32, #tpu.memory_space<vmem>>) attributes {dimension_semantics = [#tpu.dimension_semantics<parallel>, #tpu.dimension_semantics<parallel>], iteration_bounds = array<i64: 2, 2>, scalar_prefetch = 0 : i64, scratch_operands = 0 : i64, tpu.core_type = #tpu.core_type<tc>, window_params = [{transform_indices = @transform_0, window_bounds = array<i64: 1, 32, 128>}, {pipeline_mode = #tpu.pipeline_mode<synchronous>, transform_indices = @transform_1, window_bounds = array<i64: 16, 32>}, {pipeline_mode = #tpu.pipeline_mode<synchronous>, transform_indices = @transform_2, window_bounds = array<i64: 8, 16>}, {pipeline_mode = #tpu.pipeline_mode<synchronous>, transform_indices = @transform_3, window_bounds = array<i64: 3, 8>}, {transform_indices = @transform_4, window_bounds = array<i64: 1, 4, 128>}]} {
    %c0 = arith.constant 0 : index
    %c0_0 = arith.constant 0 : index
    %c0_1 = arith.constant 0 : index
    %0 = vector.load %arg2[%c0, %c0_0, %c0_1] : memref<1x32x128xf32, #tpu.memory_space<vmem>>, vector<1x32x128xf32>
    %1 = vector.shape_cast %0 : vector<1x32x128xf32> to vector<32x128xf32>
    %2 = arith.truncf %1 : vector<32x128xf32> to vector<32x128xbf16>
    %c0_2 = arith.constant 0 : index
    %c0_3 = arith.constant 0 : index
    %3 = vector.load %arg3[%c0_2, %c0_3] : memref<16x32xbf16, #tpu.memory_space<vmem>>, vector<16x32xbf16>
    %cst = arith.constant dense<0.000000e+00> : vector<16x128xf32>
    %4 = tpu.matmul %3, %2, %cst {dimension_numbers = #tpu.dot_dimension_numbers<[1], [0], [0], [1], [0, 0, 1, 1], [], []>} : vector<16x32xbf16>, vector<32x128xbf16>, vector<16x128xf32> -> vector<16x128xf32>
    %5 = arith.truncf %4 : vector<16x128xf32> to vector<16x128xbf16>
    %cst_4 = arith.constant 0.000000e+00 : bf16
    %6 = vector.broadcast %cst_4 : bf16 to vector<16x128xbf16>
    %7 = arith.cmpf ogt, %5, %6 : vector<16x128xbf16>
    %8 = math.exp %5 : vector<16x128xbf16>
    %cst_5 = arith.constant 1.000000e+00 : bf16
    %9 = vector.broadcast %cst_5 : bf16 to vector<16x128xbf16>
    %10 = arith.subf %8, %9 : vector<16x128xbf16>
    %11 = arith.select %7, %5, %10 : vector<16x128xi1>, vector<16x128xbf16>
    %c0_6 = arith.constant 0 : index
    %c0_7 = arith.constant 0 : index
    %12 = vector.load %arg4[%c0_6, %c0_7] : memref<8x16xbf16, #tpu.memory_space<vmem>>, vector<8x16xbf16>
    %cst_8 = arith.constant dense<0.000000e+00> : vector<8x128xf32>
    %13 = tpu.matmul %12, %11, %cst_8 {dimension_numbers = #tpu.dot_dimension_numbers<[1], [0], [0], [1], [0, 0, 1, 1], [], []>} : vector<8x16xbf16>, vector<16x128xbf16>, vector<8x128xf32> -> vector<8x128xf32>
    %14 = arith.truncf %13 : vector<8x128xf32> to vector<8x128xbf16>
    %cst_9 = arith.constant 0.000000e+00 : bf16
    %15 = vector.broadcast %cst_9 : bf16 to vector<8x128xbf16>
    %16 = arith.cmpf ogt, %14, %15 : vector<8x128xbf16>
    %17 = math.exp %14 : vector<8x128xbf16>
    %cst_10 = arith.constant 1.000000e+00 : bf16
    %18 = vector.broadcast %cst_10 : bf16 to vector<8x128xbf16>
    %19 = arith.subf %17, %18 : vector<8x128xbf16>
    %20 = arith.select %16, %14, %19 : vector<8x128xi1>, vector<8x128xbf16>
    %c0_11 = arith.constant 0 : index
    %c0_12 = arith.constant 0 : index
    %21 = vector.load %arg5[%c0_11, %c0_12] : memref<3x8xbf16, #tpu.memory_space<vmem>>, vector<3x8xbf16>
    %cst_13 = arith.constant dense<0.000000e+00> : vector<3x128xf32>
    %22 = tpu.matmul %21, %20, %cst_13 {dimension_numbers = #tpu.dot_dimension_numbers<[1], [0], [0], [1], [0, 0, 1, 1], [], []>} : vector<3x8xbf16>, vector<8x128xbf16>, vector<3x128xf32> -> vector<3x128xf32>
    %cst_14 = arith.constant 5.000000e-01 : f32
    %23 = vector.broadcast %cst_14 : f32 to vector<3x128xf32>
    %24 = arith.mulf %23, %22 : vector<3x128xf32>
    %25 = math.tanh %24 : vector<3x128xf32>
    %cst_15 = arith.constant 5.000000e-01 : f32
    %26 = vector.broadcast %cst_15 : f32 to vector<3x128xf32>
    %27 = arith.mulf %26, %25 : vector<3x128xf32>
    %cst_16 = arith.constant 5.000000e-01 : f32
    %28 = vector.broadcast %cst_16 : f32 to vector<3x128xf32>
    %29 = arith.addf %27, %28 : vector<3x128xf32>
    %30 = tpu.iota {dimensions = array<i32: 0>} : vector<3x1xi32>
    %c0_i32 = arith.constant 0 : i32
    %31 = vector.broadcast %c0_i32 : i32 to vector<3x1xi32>
    %32 = arith.cmpi eq, %30, %31 : vector<3x1xi32>
    %c1_i32 = arith.constant 1 : i32
    %33 = vector.broadcast %c1_i32 : i32 to vector<3x1xi32>
    %34 = arith.cmpi eq, %30, %33 : vector<3x1xi32>
    %cst_17 = arith.constant 6.28318548 : f32
    %cst_18 = arith.constant 1.000000e+01 : f32
    %35 = vector.broadcast %cst_17 : f32 to vector<3x1xf32>
    %36 = vector.broadcast %cst_18 : f32 to vector<3x1xf32>
    %37 = arith.select %34, %35, %36 : vector<3x1xi1>, vector<3x1xf32>
    %cst_19 = arith.constant 1.04719758 : f32
    %38 = vector.broadcast %cst_19 : f32 to vector<3x1xf32>
    %39 = arith.select %32, %38, %37 : vector<3x1xi1>, vector<3x1xf32>
    %40 = vector.broadcast %39 : vector<3x1xf32> to vector<3x128xf32>
    %41 = arith.mulf %29, %40 : vector<3x128xf32>
    %42 = vector.extract_strided_slice %41 {offsets = [0, 0], sizes = [2, 128], strides = [1, 1]} : vector<3x128xf32> to vector<2x128xf32>
    %43 = math.sin %42 : vector<2x128xf32>
    %44 = math.cos %42 : vector<2x128xf32>
    %45 = vector.extract_strided_slice %43 {offsets = [0, 0], sizes = [1, 128], strides = [1, 1]} : vector<2x128xf32> to vector<1x128xf32>
    %46 = vector.extract_strided_slice %44 {offsets = [1, 0], sizes = [1, 128], strides = [1, 1]} : vector<2x128xf32> to vector<1x128xf32>
    %47 = arith.mulf %45, %46 : vector<1x128xf32>
    %48 = vector.extract_strided_slice %43 {offsets = [0, 0], sizes = [1, 128], strides = [1, 1]} : vector<2x128xf32> to vector<1x128xf32>
    %49 = vector.extract_strided_slice %43 {offsets = [1, 0], sizes = [1, 128], strides = [1, 1]} : vector<2x128xf32> to vector<1x128xf32>
    %50 = arith.mulf %48, %49 : vector<1x128xf32>
    %51 = vector.extract_strided_slice %44 {offsets = [0, 0], sizes = [1, 128], strides = [1, 1]} : vector<2x128xf32> to vector<1x128xf32>
    %52 = arith.mulf %47, %47 : vector<1x128xf32>
    %53 = arith.mulf %50, %50 : vector<1x128xf32>
    %54 = arith.addf %52, %53 : vector<1x128xf32>
    %55 = arith.mulf %51, %51 : vector<1x128xf32>
    %56 = arith.addf %54, %55 : vector<1x128xf32>
    %cst_20 = arith.constant 1.000000e-24 : f32
    %57 = vector.broadcast %cst_20 : f32 to vector<1x128xf32>
    %58 = arith.maximumf %56, %57 : vector<1x128xf32>
    %59 = math.rsqrt %58 : vector<1x128xf32>
    %60 = arith.mulf %47, %59 : vector<1x128xf32>
    %c0_21 = arith.constant 0 : index
    %c0_22 = arith.constant 0 : index
    %c0_23 = arith.constant 0 : index
    %61 = vector.load %arg6[%c0_21, %c0_22, %c0_23] : memref<1x4x128xf32, #tpu.memory_space<vmem>>, vector<1x1x128xf32>
    %62 = vector.shape_cast %61 : vector<1x1x128xf32> to vector<1x128xf32>
    %63 = vector.shape_cast %60 : vector<1x128xf32> to vector<1x1x128xf32>
    tpu.vector_store %arg6[%c0_21, %c0_22, %c0_23], %63 {strides = array<i32>} : memref<1x4x128xf32, #tpu.memory_space<vmem>>, vector<1x1x128xf32>,
    %64 = arith.mulf %50, %59 : vector<1x128xf32>
    %c0_24 = arith.constant 0 : index
    %c1 = arith.constant 1 : index
    %c0_25 = arith.constant 0 : index
    %65 = vector.load %arg6[%c0_24, %c1, %c0_25] : memref<1x4x128xf32, #tpu.memory_space<vmem>>, vector<1x1x128xf32>
    %66 = vector.shape_cast %65 : vector<1x1x128xf32> to vector<1x128xf32>
    %67 = vector.shape_cast %64 : vector<1x128xf32> to vector<1x1x128xf32>
    tpu.vector_store %arg6[%c0_24, %c1, %c0_25], %67 {strides = array<i32>} : memref<1x4x128xf32, #tpu.memory_space<vmem>>, vector<1x1x128xf32>,
    %68 = arith.mulf %51, %59 : vector<1x128xf32>
    %c0_26 = arith.constant 0 : index
    %c2 = arith.constant 2 : index
    %c0_27 = arith.constant 0 : index
    %69 = vector.load %arg6[%c0_26, %c2, %c0_27] : memref<1x4x128xf32, #tpu.memory_space<vmem>>, vector<1x1x128xf32>
    %70 = vector.shape_cast %69 : vector<1x1x128xf32> to vector<1x128xf32>
    %71 = vector.shape_cast %68 : vector<1x128xf32> to vector<1x1x128xf32>
    tpu.vector_store %arg6[%c0_26, %c2, %c0_27], %71 {strides = array<i32>} : memref<1x4x128xf32, #tpu.memory_space<vmem>>, vector<1x1x128xf32>,
    %72 = vector.extract_strided_slice %41 {offsets = [2, 0], sizes = [1, 128], strides = [1, 1]} : vector<3x128xf32> to vector<1x128xf32>
    %c0_28 = arith.constant 0 : index
    %c3 = arith.constant 3 : index
    %c0_29 = arith.constant 0 : index
    %73 = vector.load %arg6[%c0_28, %c3, %c0_29] : memref<1x4x128xf32, #tpu.memory_space<vmem>>, vector<1x1x128xf32>
    %74 = vector.shape_cast %73 : vector<1x1x128xf32> to vector<1x128xf32>
    %75 = vector.shape_cast %72 : vector<1x128xf32> to vector<1x1x128xf32>
    tpu.vector_store %arg6[%c0_28, %c3, %c0_29], %75 {strides = array<i32>} : memref<1x4x128xf32, #tpu.memory_space<vmem>>, vector<1x1x128xf32>,
    return
  }
  func.func @transform_0(%arg0: i32, %arg1: i32) -> (i32, i32, i32) {
    %c0_i32 = arith.constant 0 : i32
    %c0_i32_0 = arith.constant 0 : i32
    return %arg0, %c0_i32, %arg1 : i32, i32, i32
  }
  func.func @transform_1(%arg0: i32, %arg1: i32) -> (i32, i32) {
    %c0_i32 = arith.constant 0 : i32
    %c0_i32_0 = arith.constant 0 : i32
    %c0_i32_1 = arith.constant 0 : i32
    return %c0_i32, %c0_i32_0 : i32, i32
  }
  func.func @transform_2(%arg0: i32, %arg1: i32) -> (i32, i32) {
    %c0_i32 = arith.constant 0 : i32
    %c0_i32_0 = arith.constant 0 : i32
    %c0_i32_1 = arith.constant 0 : i32
    return %c0_i32, %c0_i32_0 : i32, i32
  }
  func.func @transform_3(%arg0: i32, %arg1: i32) -> (i32, i32) {
    %c0_i32 = arith.constant 0 : i32
    %c0_i32_0 = arith.constant 0 : i32
    %c0_i32_1 = arith.constant 0 : i32
    return %c0_i32, %c0_i32_0 : i32, i32
  }
  func.func @transform_4(%arg0: i32, %arg1: i32) -> (i32, i32, i32) {
    %c0_i32 = arith.constant 0 : i32
    %c0_i32_0 = arith.constant 0 : i32
    return %arg0, %c0_i32, %arg1 : i32, i32, i32
  }
}

</mosaic_0001>

<llo_original>
// kernel: tpu_custom_call.1
$region0: #{tpu_custom_call.1}
  #allocation0 [shape = 'u32[]', space=smem, size = 0x4, offset = 0x4, fixed_abs, tag = 'smem constant byte address 0x4 - core index']
  #allocation1 [shape = 'u32[144,128]{1,0:T(1,128)}', space=vmem, size = 0x12000, scoped, tag = 'internal scratch']
  %s0 = inlined_call_operand.hbm [shape: f32[2,32,256], index: 0, kind: input, shape index: {}]
  %s1 = inlined_call_operand.hbm [shape: bf16[16,32], index: 1, kind: input, shape index: {}]
  %s2 = inlined_call_operand.hbm [shape: bf16[8,16], index: 2, kind: input, shape index: {}]
  %s3 = inlined_call_operand.vmem [shape: bf16[3,8], index: 3, kind: input, shape index: {}]
  %s4 = inlined_call_operand.hbm [shape: f32[2,4,256], index: 4, kind: output, shape index: {}]
  %s5 = sld [smem:[#allocation0]]
  $region61: #{tpu_custom_call.1} parent=0
    _
  %s7 = ssub.s32 1, %s5
  %s8 = scalar_select 0, %s7, %s5
  $region1: #{tpu_custom_call.1} parent=0
    #allocation2 [shape = 'u8[32768]{0}', space=vmem, size = 0x8000, scoped, tag = 'input window, operand 0']
    #allocation3 [shape = 's32[2]{0}', space=sflag, size = 0x8, scoped, tag = 'scoped memory for tpu_custom_call.1']
    #allocation4 [shape = 's32[2]{0}', space=sflag, size = 0x8, scoped, tag = 'scoped memory for tpu_custom_call.1']
    #allocation5 [shape = 'u8[4096]{0}', space=vmem, size = 0x1000, scoped, tag = 'input window, operand 1, single buffered']
    #allocation6 [shape = 's32[1]{0}', space=sflag, size = 0x4, scoped, tag = 'scoped memory for tpu_custom_call.1']
    #allocation7 [shape = 'u8[2048]{0}', space=vmem, size = 0x800, scoped, tag = 'input window, operand 2, single buffered']
    #allocation8 [shape = 'u8[4096]{0}', space=vmem, size = 0x1000, scoped, tag = 'output window, operand 0']
    %9 = vsyncpa [#allocation3], 0
    %s10 = scalar_lea.sflag [#allocation3], 1
    %11 = vsyncpa %s10, 0
    %12 = vsyncpa [#allocation6], 0
    %13 = vsyncpa [#allocation4], 0
    %s14 = scalar_lea.sflag [#allocation4], 1
    %15 = vsyncpa %s14, 0
    loop: start=0, step=1, limit=6
    $region2: #{tpu_custom_call.1} parent=1 // loop_pre_header
      _
    $region3: #{tpu_custom_call.1} parent=1 // loop_header
      %s17 = sphi 0, %s21
      %p18 = scmp.ge.s32.totalorder %s17, 6
      %s24 = sphi 0, %s36
      %s25 = sphi 0, %s32
      %s26 = sphi 0, %s24
      %s27 = sphi 0, %s25
      %s28 = sphi 0, %s26
      %s29 = sphi 0, %s27
      %s41 = sphi 0, %s43
      %s44 = sphi 0, %s41
      %s45 = sphi 0, %s44
      %s61 = sphi 0, %s45
      %s65 = sphi 0, %s65
      %s67 = sphi 0, %s65
      %s68 = sphi 0, %s67
      %s82 = sphi 0, %s68
      %s86 = sphi 0, %s86
      %s88 = sphi 0, %s86
      %s89 = sphi 0, %s88
      %s103 = sphi 0, %s89
      %s107 = sphi 0, %s107
      %s109 = sphi 0, %s107
      %s110 = sphi 0, %s109
      %s124 = sphi 0, %s110
      %s132 = sphi 0, %s134
      %s135 = sphi 0, %s132
      %s136 = sphi 0, %s135
      %s152 = sphi 0, %s136
    $region4: #{tpu_custom_call.1} parent=1 // loop_header_branch
      %20 = sbr.rel (%p18) target = $region8
    $region5: #{tpu_custom_call.1} parent=1 // loop_body
      %s22 = ssub.s32 %s17, 1
      %s23 = ssub.s32 %s17, 2
      %s30 = sadd.s32 1, %s25
      %p31 = scmp.ge.s32.totalorder %s30, 2
      %s32 = scalar_select %p31, 0, %s30
      %s33 = sadd.s32 1, %s24
      %s34 = scalar_select %p31, %s33, %s24
      %p35 = scmp.ge.s32.totalorder %s34, 2
      %s36 = scalar_select %p35, 0, %s34
      %s37 = ssub.s32 %s24, %s36
      %s38 = ssub.s32 %s25, %s32
      %s39 = sor.u32 %s37, %s38
      %p40 = scmp.eq.s32.totalorder %s39, 0
      %s42 = sadd.s32 %s41, 1
      %s43 = scalar_select %p40, %s41, %s42
      %p46 = pneg %p40
      %p47 = scmp.eq.s32.totalorder %s17, 3
      %p48 = por %p46, %p47
      %p49 = scmp.ne.s32.totalorder %s41, %s44
      %p50 = scmp.eq.s32.totalorder %s17, 0
      %p51 = por %p49, %p50
      %p52 = scmp.ne.s32.totalorder %s41, %s44
      %p53 = scmp.eq.s32.totalorder %s22, 3
      %p54 = por %p52, %p53
      %p55 = scmp.ne.s32.totalorder %s44, %s45
      %p56 = scmp.eq.s32.totalorder %s22, 0
      %p57 = por %p55, %p56
      %p58 = scmp.ne.s32.totalorder %s44, %s45
      %p59 = scmp.eq.s32.totalorder %s23, 3
      %p60 = por %p58, %p59
      %p62 = scmp.ne.s32.totalorder %s45, %s61
      %p63 = scmp.eq.s32.totalorder %s23, 0
      %p64 = por %p62, %p63
      %s66 = sadd.s32 %s65, 1
      %p69 = scmp.eq.s32.totalorder %s17, 3
      %p70 = scmp.ne.s32.totalorder %s65, %s67
      %p71 = scmp.eq.s32.totalorder %s17, 0
      %p72 = por %p70, %p71
      %p73 = scmp.ne.s32.totalorder %s65, %s67
      %p74 = scmp.eq.s32.totalorder %s22, 3
      %p75 = por %p73, %p74
      %p76 = scmp.ne.s32.totalorder %s67, %s68
      %p77 = scmp.eq.s32.totalorder %s22, 0
      %p78 = por %p76, %p77
      %p79 = scmp.ne.s32.totalorder %s67, %s68
      %p80 = scmp.eq.s32.totalorder %s23, 3
      %p81 = por %p79, %p80
      %p83 = scmp.ne.s32.totalorder %s68, %s82
      %p84 = scmp.eq.s32.totalorder %s23, 0
      %p85 = por %p83, %p84
      %s87 = sadd.s32 %s86, 1
      %p90 = scmp.eq.s32.totalorder %s17, 3
      %p91 = scmp.ne.s32.totalorder %s86, %s88
      %p92 = scmp.eq.s32.totalorder %s17, 0
      %p93 = por %p91, %p92
      %p94 = scmp.ne.s32.totalorder %s86, %s88
      %p95 = scmp.eq.s32.totalorder %s22, 3
      %p96 = por %p94, %p95
      %p97 = scmp.ne.s32.totalorder %s88, %s89
      %p98 = scmp.eq.s32.totalorder %s22, 0
      %p99 = por %p97, %p98
      %p100 = scmp.ne.s32.totalorder %s88, %s89
      %p101 = scmp.eq.s32.totalorder %s23, 3
      %p102 = por %p100, %p101
      %p104 = scmp.ne.s32.totalorder %s89, %s103
      %p105 = scmp.eq.s32.totalorder %s23, 0
      %p106 = por %p104, %p105
      %s108 = sadd.s32 %s107, 1
      %p111 = scmp.eq.s32.totalorder %s17, 3
      %p112 = scmp.ne.s32.totalorder %s107, %s109
      %p113 = scmp.eq.s32.totalorder %s17, 0
      %p114 = por %p112, %p113
      %p115 = scmp.ne.s32.totalorder %s107, %s109
      %p116 = scmp.eq.s32.totalorder %s22, 3
      %p117 = por %p115, %p116
      %p118 = scmp.ne.s32.totalorder %s109, %s110
      %p119 = scmp.eq.s32.totalorder %s22, 0
      %p120 = por %p118, %p119
      %p121 = scmp.ne.s32.totalorder %s109, %s110
      %p122 = scmp.eq.s32.totalorder %s23, 3
      %p123 = por %p121, %p122
      %p125 = scmp.ne.s32.totalorder %s110, %s124
      %p126 = scmp.eq.s32.totalorder %s23, 0
      %p127 = por %p125, %p126
      %s128 = ssub.s32 %s24, %s36
      %s129 = ssub.s32 %s25, %s32
      %s130 = sor.u32 %s128, %s129
      %p131 = scmp.eq.s32.totalorder %s130, 0
      %s133 = sadd.s32 %s132, 1
      %s134 = scalar_select %p131, %s132, %s133
      %p137 = pneg %p131
      %p138 = scmp.eq.s32.totalorder %s17, 3
      %p139 = por %p137, %p138
      %p140 = scmp.ne.s32.totalorder %s132, %s135
      %p141 = scmp.eq.s32.totalorder %s17, 0
      %p142 = por %p140, %p141
      %p143 = scmp.ne.s32.totalorder %s132, %s135
      %p144 = scmp.eq.s32.totalorder %s22, 3
      %p145 = por %p143, %p144
      %p146 = scmp.ne.s32.totalorder %s135, %s136
      %p147 = scmp.eq.s32.totalorder %s22, 0
      %p148 = por %p146, %p147
      %p149 = scmp.ne.s32.totalorder %s135, %s136
      %p150 = scmp.eq.s32.totalorder %s23, 3
      %p151 = por %p149, %p150
      %p153 = scmp.ne.s32.totalorder %s136, %s152
      %p154 = scmp.eq.s32.totalorder %s23, 0
      %p155 = por %p153, %p154
      %p156 = scmp.le.s32.totalorder 1, %s17
      %p157 = scmp.lt.s32.totalorder %s17, 5
      %p158 = pnand %p156, %p157
      %p159 = pneg %p158
      // Predicated region
      $region9: #{tpu_custom_call.1} parent=5 // pred_check
        _
      $region10: #{tpu_custom_call.1} parent=5 // pred_check_branch
        %161 = sbr.rel (%p158) target = $region12
      $region11: #{tpu_custom_call.1} parent=5 // pred_region
        %s162 = ssub.s32 %s17, 1
        // Predicated region
        $region13: #{tpu_custom_call.1} parent=11 // pred_check
          %p163 = pneg %p78
        $region14: #{tpu_custom_call.1} parent=11 // pred_check_branch
          %165 = sbr.rel (%p163) target = $region16
        $region15: #{tpu_custom_call.1} parent=11 // pred_region
          %s167 = ssub.s32 128, 128
          %168 = vsyncadd [#allocation6], %s167
          %s169 = sshll.u32 [#allocation5], 4
          %s170 = int_to_ptr.vmem [resolvable:$true] %s169
          %175 = dma.hbm_to_vmem [thread:$0]  %s1, 128, %s170, [#allocation6], 64, 64, 4
        $region16: #{tpu_custom_call.1} parent=11 // pred_fallthru
          _
        // Predicated region
        $region17: #{tpu_custom_call.1} parent=11 // pred_check
          %p176 = pneg %p99
        $region18: #{tpu_custom_call.1} parent=11 // pred_check_branch
          %178 = sbr.rel (%p176) target = $region20
        $region19: #{tpu_custom_call.1} parent=11 // pred_region
          %s180 = ssub.s32 64, 64
          %181 = vsyncadd [#allocation6], %s180
          %s183 = sshll.u32 [#allocation7], 4
          %s184 = int_to_ptr.vmem [resolvable:$true] %s183
          %186 = dma.hbm_to_vmem [thread:$0]  %s2, 64, %s184, [#allocation6]
        $region20: #{tpu_custom_call.1} parent=11 // pred_fallthru
          _
        // Predicated region
        $region21: #{tpu_custom_call.1} parent=11 // pred_check
          %p187 = pneg %p120
        $region22: #{tpu_custom_call.1} parent=11 // pred_check_branch
          %189 = sbr.rel (%p187) target = $region24
        $region23: #{tpu_custom_call.1} parent=11 // pred_region
          _
        $region24: #{tpu_custom_call.1} parent=11 // pred_fallthru
          _
      $region12: #{tpu_custom_call.1} parent=5 // pred_fallthru
        _
      %p190 = scmp.lt.s32.totalorder %s17, 4
      // Predicated region
      $region25: #{tpu_custom_call.1} parent=5 // pred_check
        %p191 = pneg %p190
      $region26: #{tpu_custom_call.1} parent=5 // pred_check_branch
        %193 = sbr.rel (%p191) target = $region28
      $region27: #{tpu_custom_call.1} parent=5 // pred_region
        // Predicated region
        $region29: #{tpu_custom_call.1} parent=27 // pred_check
          %p194 = pneg %p51
        $region30: #{tpu_custom_call.1} parent=27 // pred_check_branch
          %196 = sbr.rel (%p194) target = $region32
        $region31: #{tpu_custom_call.1} parent=27 // pred_region
          %s197 = sand.u32 %s41, 1
          %s198 = scalar_lea.sflag [#allocation3], %s197
          %s199 = sand.u32 %s41, 1
          %s200 = smul.addr %s199, 32
          %s201 = scalar_lea.vmem [#allocation2], %s200
          %s203 = ssub.s32 512, 512
          %204 = vsyncadd %s198, %s203
          %s205 = smul.addr %s24, 8
          %s206 = sadd.s32 %s25, %s205
          %s207 = smul.addr %s206, 128
          %s208 = scalar_lea.hbm %s0, %s207
          %s209 = sshll.u32 %s201, 4
          %s210 = int_to_ptr.vmem [resolvable:$true] %s209
          %215 = dma.hbm_to_vmem [thread:$0]  %s208, 512, %s210, %s198, 256, 128, 8
        $region32: #{tpu_custom_call.1} parent=27 // pred_fallthru
          _
      $region28: #{tpu_custom_call.1} parent=5 // pred_fallthru
        _
      %p216 = scmp.le.s32.totalorder 1, %s17
      %p217 = scmp.lt.s32.totalorder %s17, 5
      %p218 = pnand %p216, %p217
      %p219 = pneg %p218
      // Predicated region
      $region33: #{tpu_custom_call.1} parent=5 // pred_check
        _
      $region34: #{tpu_custom_call.1} parent=5 // pred_check_branch
        %221 = sbr.rel (%p218) target = $region36
      $region35: #{tpu_custom_call.1} parent=5 // pred_region
        %s222 = ssub.s32 %s17, 1
        %s223 = sand.u32 %s44, 1
        %s224 = scalar_lea.sflag [#allocation3], %s223
        %s225 = sand.u32 %s44, 1
        %s226 = smul.addr %s225, 32
        %s227 = scalar_lea.vmem [#allocation2], %s226
        // Predicated region
        $region37: #{tpu_custom_call.1} parent=35 // pred_check
          %p228 = pneg %p57
        $region38: #{tpu_custom_call.1} parent=35 // pred_check_branch
          %230 = sbr.rel (%p228) target = $region40
        $region39: #{tpu_custom_call.1} parent=35 // pred_region
          %231 = dma.done %s224, 512
        $region40: #{tpu_custom_call.1} parent=35 // pred_fallthru
          _
        // Predicated region
        $region41: #{tpu_custom_call.1} parent=35 // pred_check
          %p232 = pneg %p78
        $region42: #{tpu_custom_call.1} parent=35 // pred_check_branch
          %234 = sbr.rel (%p232) target = $region44
        $region43: #{tpu_custom_call.1} parent=35 // pred_region
          %235 = dma.done [#allocation6], 128
        $region44: #{tpu_custom_call.1} parent=35 // pred_fallthru
          _
        // Predicated region
        $region45: #{tpu_custom_call.1} parent=35 // pred_check
          %p236 = pneg %p99
        $region46: #{tpu_custom_call.1} parent=35 // pred_check_branch
          %238 = sbr.rel (%p236) target = $region48
        $region47: #{tpu_custom_call.1} parent=35 // pred_region
          %239 = dma.done [#allocation6], 64
        $region48: #{tpu_custom_call.1} parent=35 // pred_fallthru
          _
        %s240 = sand.u32 %s44, 1
        %s241 = scalar_lea.sflag [#allocation3], %s240
        %s242 = sand.u32 %s44, 1
        %s243 = smul.addr %s242, 32
        %s244 = scalar_lea.vmem [#allocation2], %s243
        %p245 = pneg %p57
        %p246 = pneg %p54
        %p247 = pneg %p78
        %p248 = pneg %p75
        %p249 = pneg %p99
        %p250 = pneg %p96
        %p251 = pneg %p120
        %p252 = pneg %p117
        %p253 = pneg %p148
        %p254 = pneg %p145
        %s255 = sand.u32 %s135, 1
        %s256 = scalar_lea.sflag [#allocation4], %s255
        %s257 = sand.u32 %s135, 1
        %s258 = smul.addr %s257, 4
        %s259 = scalar_lea.vmem [#allocation8], %s258
        %v262 = vld [vmem:[%s227] sm:$0xff]
        %v263 = vld [vmem:[%s227 + $0x8] sm:$0xff]
        %v264 = vld [vmem:[%s227 + $0x10] sm:$0xff]
        %v265 = vld [vmem:[%s227 + $0x18] sm:$0xff]
        %v266 = vpack.c.bf16 %v263, %v262
        %v267 = vpack.c.bf16 %v265, %v264
        %v268 = vld [vmem:[#allocation5] sm:$0xf]
        %v269 = vld [vmem:[#allocation5 + $0x4] sm:$0xf]
        %v272 = vunpack.c.l.b16 %v268
        %v273 = vunpack.c.l.b16 %v269
        %v274 = vpack.c.b16 %v273, %v272
        %vm275 = vcmask 261120
        %v277 = vsel %vm275, %v274, 0
        %279 = vmatprep.subr.bf16.mxu0 0
        %280 = vmatpush1.bf16.msra.mxu0 0
        %281 = vmatprep.subr.bf16.mxu0 0
        %282 = vmatpush1.bf16.msra.mxu0 0
        %283 = vmatprep.subr.bf16.mxu0 0
        %284 = vmatpush1.bf16.msra.mxu0 0
        %285 = vmatprep.subr.bf16.mxu0 0
        %286 = vmatpush1.bf16.msra.mxu0 0
        %287 = vmatprep.subr.bf16.mxu0 0
        %288 = vmatpush1.bf16.msra.mxu0 0
        %289 = vmatprep.subr.bf16.mxu0 0
        %290 = vmatpush1.bf16.msra.mxu0 0
        %291 = vmatprep.subr.bf16.mxu0 0
        %292 = vmatpush1.bf16.msra.mxu0 %v267
        %293 = vmatprep.subr.bf16.mxu0 0
        %294 = vmatpush1.bf16.msra.mxu0 %v266
        %295 = vmatprep.subr.bf16.mxu0 0
        %296 = vmatpush2.bf16.msra.mxu0 0
        %297 = vmatprep.subr.bf16.mxu0 0
        %298 = vmatpush2.bf16.msra.mxu0 0
        %299 = vmatprep.subr.bf16.mxu0 0
        %300 = vmatpush2.bf16.msra.mxu0 0
        %301 = vmatprep.subr.bf16.mxu0 0
        %302 = vmatpush2.bf16.msra.mxu0 0
        %303 = vmatprep.subr.bf16.mxu0 0
        %304 = vmatpush2.bf16.msra.mxu0 0
        %305 = vmatprep.subr.bf16.mxu0 0
        %306 = vmatpush2.bf16.msra.mxu0 0
        %307 = vmatprep.subr.bf16.mxu0 0
        %308 = vmatpush2.bf16.msra.mxu0 0
        %309 = vmatprep.subr.bf16.mxu0 0
        %310 = vmatpush2.bf16.msra.mxu0 0
        %311 = vmatprep.mubr.bf16.mxu0 0
        %312 = vmatmul.mubr.bf16.gmra.mxu0 %v277
        %v313 = vpop.f32.mrf.mxu0
        %v314 = vadd.f32 0.0, %v313
        %v315 = vpop.f32.mrf.mxu0
        %v316 = vpop.f32.mrf.mxu0
        %v317 = vadd.f32 0.0, %v316
        %v318 = vpop.f32.mrf.mxu0
        %319 = vdwg.mxu0
        %v320 = vpack.c.bf16 %v317, %v314
        %vm321 = vcmp.gt.bf16.partialorder %v320, 0
        %v323 = vmul.bf16 %v320, 1069105081
        %v324 = vpow.bf16.pop %v323
        %v325 = vsub.bf16 %v324, 1065369472
        %v326 = vsel %vm321, %v320, %v325
        %v327 = vld [vmem:[#allocation7] sm:$0xf]
        %vm328 = vcmask 130048
        %v330 = vsel %vm328, %v327, 0
        %332 = vmatprep.subr.bf16.mxu0 0
        %333 = vmatpush1.bf16.msra.mxu0 0
        %334 = vmatprep.subr.bf16.mxu0 0
        %335 = vmatpush1.bf16.msra.mxu0 0
        %336 = vmatprep.subr.bf16.mxu0 0
        %337 = vmatpush1.bf16.msra.mxu0 0
        %338 = vmatprep.subr.bf16.mxu0 0
        %339 = vmatpush1.bf16.msra.mxu0 0
        %340 = vmatprep.subr.bf16.mxu0 0
        %341 = vmatpush1.bf16.msra.mxu0 0
        %342 = vmatprep.subr.bf16.mxu0 0
        %343 = vmatpush1.bf16.msra.mxu0 0
        %344 = vmatprep.subr.bf16.mxu0 0
        %345 = vmatpush1.bf16.msra.mxu0 0
        %346 = vmatprep.subr.bf16.mxu0 0
        %347 = vmatpush1.bf16.msra.mxu0 %v326
        %348 = vmatprep.subr.bf16.mxu0 0
        %349 = vmatpush2.bf16.msra.mxu0 0
        %350 = vmatprep.subr.bf16.mxu0 0
        %351 = vmatpush2.bf16.msra.mxu0 0
        %352 = vmatprep.subr.bf16.mxu0 0
        %353 = vmatpush2.bf16.msra.mxu0 0
        %354 = vmatprep.subr.bf16.mxu0 0
        %355 = vmatpush2.bf16.msra.mxu0 0
        %356 = vmatprep.subr.bf16.mxu0 0
        %357 = vmatpush2.bf16.msra.mxu0 0
        %358 = vmatprep.subr.bf16.mxu0 0
        %359 = vmatpush2.bf16.msra.mxu0 0
        %360 = vmatprep.subr.bf16.mxu0 0
        %361 = vmatpush2.bf16.msra.mxu0 0
        %362 = vmatprep.subr.bf16.mxu0 0
        %363 = vmatpush2.bf16.msra.mxu0 0
        %364 = vmatprep.mubr.bf16.mxu0 0
        %365 = vmatmul.mubr.bf16.gmra.mxu0 %v330
        %v366 = vpop.f32.mrf.mxu0
        %v367 = vadd.f32 0.0, %v366
        %v368 = vpop.f32.mrf.mxu0
        %v369 = vpop.f32.mrf.mxu0
        %v370 = vpop.f32.mrf.mxu0
        %371 = vdwg.mxu0
        %v372 = vpack.c.bf16 %v367, %v367
        %vm373 = vcmp.gt.bf16.partialorder %v372, 0
        %v375 = vmul.bf16 %v372, 1069105081
        %v376 = vpow.bf16.pop %v375
        %v377 = vsub.bf16 %v376, 1065369472
        %v378 = vsel %vm373, %v372, %v377
        %v379 = vld [vmem:[%s3] sm:$0x3]
        %vm380 = vcmask 64512
        %v382 = vsel %vm380, %v379, 0
        %vm384 = vcmask 1043456
        %v386 = vsel %vm384, %v378, 0
        %388 = vmatprep.subr.bf16.mxu0 0
        %389 = vmatpush1.bf16.msra.mxu0 0
        %390 = vmatprep.subr.bf16.mxu0 0
        %391 = vmatpush1.bf16.msra.mxu0 0
        %392 = vmatprep.subr.bf16.mxu0 0
        %393 = vmatpush1.bf16.msra.mxu0 0
        %394 = vmatprep.subr.bf16.mxu0 0
        %395 = vmatpush1.bf16.msra.mxu0 0
        %396 = vmatprep.subr.bf16.mxu0 0
        %397 = vmatpush1.bf16.msra.mxu0 0
        %398 = vmatprep.subr.bf16.mxu0 0
        %399 = vmatpush1.bf16.msra.mxu0 0
        %400 = vmatprep.subr.bf16.mxu0 0
        %401 = vmatpush1.bf16.msra.mxu0 0
        %402 = vmatprep.subr.bf16.mxu0 0
        %403 = vmatpush1.bf16.msra.mxu0 %v386
        %404 = vmatprep.subr.bf16.mxu0 0
        %405 = vmatpush2.bf16.msra.mxu0 0
        %406 = vmatprep.subr.bf16.mxu0 0
        %407 = vmatpush2.bf16.msra.mxu0 0
        %408 = vmatprep.subr.bf16.mxu0 0
        %409 = vmatpush2.bf16.msra.mxu0 0
        %410 = vmatprep.subr.bf16.mxu0 0
        %411 = vmatpush2.bf16.msra.mxu0 0
        %412 = vmatprep.subr.bf16.mxu0 0
        %413 = vmatpush2.bf16.msra.mxu0 0
        %414 = vmatprep.subr.bf16.mxu0 0
        %415 = vmatpush2.bf16.msra.mxu0 0
        %416 = vmatprep.subr.bf16.mxu0 0
        %417 = vmatpush2.bf16.msra.mxu0 0
        %418 = vmatprep.subr.bf16.mxu0 0
        %419 = vmatpush2.bf16.msra.mxu0 0
        %420 = vmatprep.mubr.bf16.mxu0 0
        %421 = vmatmul.mubr.bf16.gmra.mxu0 %v382
        %v422 = vpop.f32.mrf.mxu0
        %v423 = vadd.f32 0.0, %v422
        %v424 = vpop.f32.mrf.mxu0
        %v425 = vpop.f32.mrf.mxu0
        %v426 = vpop.f32.mrf.mxu0
        %427 = vdwg.mxu0
        %v428 = vmul.f32 %v423, 0.5
        %v429 = vtanh.pop %v428
        %v430 = vmul.f32 %v429, 0.5
        %v431 = vadd.f32 %v430, 0.5
        %v432 = vlaneseq
        %v433 = vshrl.u32 %v432, 7
        %vm434 = vcmp.eq.s32.totalorder %v433, 0
        %vm435 = vcmp.eq.s32.totalorder %v433, 1
        %v436 = vsel %vm435, 6.2831855, 10.0
        %v437 = vsel %vm434, 1.0471976, %v436
        %v438 = vmul.f32 %v431, %v437
        %v439 = vand.u32 2147483647, %v438
        %vm440 = vcmp.le.f32.partialorder %v439, 0.7853982
        %vm441 = vcmp.lt.s32.totalorder %v438, 0
        %v442 = vand.u32 %v438, 2139095040
        %v443 = vshrl.u32 %v442, 23
        %v444 = vsub.s32 %v443, 127
        %v445 = vand.u32 2147483647, %v438
        %v446 = vand.u32 %v445, 8388607
        %v447 = vor.u32 %v446, 8388608
        %v448 = vsub.s32 0, %v447
        %v449 = vadd.s32 %v444, 1
        %vm450 = vcmp.gt.s32.totalorder %v449, 0
        %v451 = vsel %vm450, %v449, 0
        %v452 = vshrl.u32 %v451, 5
        %v453 = vand.u32 %v451, 31
        %v454 = vsub.s32 32, %v453
        %v455 = vshrl.u32 683565275, %v454
        %v456 = vshll.u32 683565275, %v453
        %v457 = vshrl.u32 2475754826, %v454
        %v458 = vor.u32 %v456, %v457
        %v459 = vshll.u32 2475754826, %v453
        %v460 = vshrl.u32 2131351028, %v454
        %v461 = vor.u32 %v459, %v460
        %v462 = vshll.u32 2131351028, %v453
        %v463 = vshrl.u32 2102212464, %v454
        %v464 = vor.u32 %v462, %v463
        %v465 = vshll.u32 2102212464, %v453
        %v466 = vshrl.u32 920167782, %v454
        %v467 = vor.u32 %v465, %v466
        %v468 = vshll.u32 920167782, %v453
        %v469 = vshrl.u32 1326507024, %v454
        %v470 = vor.u32 %v468, %v469
        %vm471 = vcmp.lt.s32.totalorder %v452, 1
        %vm472 = vcmp.lt.s32.totalorder %v452, 2
        %vm473 = vcmp.lt.s32.totalorder %v452, 3
        %vm474 = vcmp.lt.s32.totalorder %v452, 4
        %v475 = vsel %vm471, %v455, %v458
        %v476 = vsel %vm474, %v464, 2102212464
        %v477 = vsel %vm473, %v461, %v476
        %v478 = vsel %vm472, %v475, %v477
        %v479 = vsel %vm471, %v458, %v461
        %v480 = vsel %vm474, %v467, 920167782
        %v481 = vsel %vm473, %v464, %v480
        %v482 = vsel %vm472, %v479, %v481
        %v483 = vsel %vm471, %v461, %v464
        %v484 = vsel %vm474, %v470, 1326507024
        %v485 = vsel %vm473, %v467, %v484
        %v486 = vsel %vm472, %v483, %v485
        %v487 = vshll.u32 %v447, 8
        %v488 = vmul.u32.u64.compose %v487, %v486
        %v489 = vextract.low.u32 %v488
        %v490 = vextract.high.u32 %v488
        %v491 = vmul.u32.u64.compose %v487, %v482
        %v492 = vextract.low.u32 %v491
        %v493 = vextract.high.u32 %v491
        %v494 = vmul.u32 %v487, %v478
        %v495 = vadd.s32 %v490, %v492
        %vm496 = vc.u32 %v490, %v492
        %v497 = vadd.s32 %v493, 1
        %v498 = vsel %vm496, %v497, %v493
        %v499 = vadd.s32 %v494, %v498
        %v500 = vadd.s32 %v499, 536870912
        %v501 = vshrl.u32 %v500, 30
        %v502 = vshll.u32 %v501, 30
        %v503 = vsub.s32 %v499, %v502
        %vm504 = vcmp.lt.s32.totalorder %v503, 0
        %v505 = vsub.s32 0, %v503
        %v506 = vsel %vm504, %v505, %v503
        %v507 = vclz %v506
        %v508 = vsub.s32 %v507, 2
        %vm509 = vcmp.gt.s32.totalorder 0, %v508
        %v510 = vsel %vm509, 0, %v508
        %v511 = vsub.s32 32, %v510
        %v512 = vshll.u32 %v503, %v510
        %v513 = vshrl.u32 %v495, %v511
        %v514 = vor.u32 %v512, %v513
        %v515 = vsub.s32 4294967266, %v510
        %v516 = vadd.s32 %v515, 127
        %v517 = vshll.u32 %v516, 23
        %v518 = vor.u32 4788187, %v517
        %v519 = vand.u32 2147483647, %v518
        %v521 = vcvt.s32.f32 %v514
        %v522 = vmul.f32 %v521, %v519
        %v523 = vxor.u32 %v522, 2147483648
        %v524 = vsel %vm441, %v523, %v522
        %v525 = vsub.s32 4, %v501
        %v526 = vsel %vm441, %v525, %v501
        %v527 = vsel %vm440, %v438, %v524
        %v528 = vsel %vm440, 0, %v526
        %v529 = vcosq.f32.pop %v527
        %v530 = vsinq.f32.pop %v527
        %vm531 = vweird.f32 %v438
        %v532 = vadd.s32 %v528, 3
        %v533 = vand.u32 %v532, 3
        %vm534 = vcmp.lt.s32.totalorder %v533, 2
        %vm535 = vcmp.eq.s32.totalorder %v533, 0
        %v536 = vxor.u32 %v530, 2147483648
        %v537 = vsel %vm535, %v529, %v536
        %vm538 = vcmp.eq.s32.totalorder %v533, 2
        %v539 = vxor.u32 %v529, 2147483648
        %v540 = vsel %vm538, %v539, %v530
        %v541 = vsel %vm534, %v537, %v540
        %v542 = vsel %vm531, nan, %v541
        %v543 = vand.u32 2147483647, %v438
        %vm544 = vcmp.le.f32.partialorder %v543, 0.7853982
        %vm545 = vcmp.lt.s32.totalorder %v438, 0
        %v546 = vand.u32 %v438, 2139095040
        %v547 = vshrl.u32 %v546, 23
        %v548 = vsub.s32 %v547, 127
        %v549 = vand.u32 2147483647, %v438
        %v550 = vand.u32 %v549, 8388607
        %v551 = vor.u32 %v550, 8388608
        %v552 = vsub.s32 0, %v551
        %v553 = vadd.s32 %v548, 1
        %vm554 = vcmp.gt.s32.totalorder %v553, 0
        %v555 = vsel %vm554, %v553, 0
        %v556 = vshrl.u32 %v555, 5
        %v557 = vand.u32 %v555, 31
        %v558 = vsub.s32 32, %v557
        %v559 = vshrl.u32 683565275, %v558
        %v560 = vshll.u32 683565275, %v557
        %v561 = vshrl.u32 2475754826, %v558
        %v562 = vor.u32 %v560, %v561
        %v563 = vshll.u32 2475754826, %v557
        %v564 = vshrl.u32 2131351028, %v558
        %v565 = vor.u32 %v563, %v564
        %v566 = vshll.u32 2131351028, %v557
        %v567 = vshrl.u32 2102212464, %v558
        %v568 = vor.u32 %v566, %v567
        %v569 = vshll.u32 2102212464, %v557
        %v570 = vshrl.u32 920167782, %v558
        %v571 = vor.u32 %v569, %v570
        %v572 = vshll.u32 920167782, %v557
        %v573 = vshrl.u32 1326507024, %v558
        %v574 = vor.u32 %v572, %v573
        %vm575 = vcmp.lt.s32.totalorder %v556, 1
        %vm576 = vcmp.lt.s32.totalorder %v556, 2
        %vm577 = vcmp.lt.s32.totalorder %v556, 3
        %vm578 = vcmp.lt.s32.totalorder %v556, 4
        %v579 = vsel %vm575, %v559, %v562
        %v580 = vsel %vm578, %v568, 2102212464
        %v581 = vsel %vm577, %v565, %v580
        %v582 = vsel %vm576, %v579, %v581
        %v583 = vsel %vm575, %v562, %v565
        %v584 = vsel %vm578, %v571, 920167782
        %v585 = vsel %vm577, %v568, %v584
        %v586 = vsel %vm576, %v583, %v585
        %v587 = vsel %vm575, %v565, %v568
        %v588 = vsel %vm578, %v574, 1326507024
        %v589 = vsel %vm577, %v571, %v588
        %v590 = vsel %vm576, %v587, %v589
        %v591 = vshll.u32 %v551, 8
        %v592 = vmul.u32.u64.compose %v591, %v590
        %v593 = vextract.low.u32 %v592
        %v594 = vextract.high.u32 %v592
        %v595 = vmul.u32.u64.compose %v591, %v586
        %v596 = vextract.low.u32 %v595
        %v597 = vextract.high.u32 %v595
        %v598 = vmul.u32 %v591, %v582
        %v599 = vadd.s32 %v594, %v596
        %vm600 = vc.u32 %v594, %v596
        %v601 = vadd.s32 %v597, 1
        %v602 = vsel %vm600, %v601, %v597
        %v603 = vadd.s32 %v598, %v602
        %v604 = vadd.s32 %v603, 536870912
        %v605 = vshrl.u32 %v604, 30
        %v606 = vshll.u32 %v605, 30
        %v607 = vsub.s32 %v603, %v606
        %vm608 = vcmp.lt.s32.totalorder %v607, 0
        %v609 = vsub.s32 0, %v607
        %v610 = vsel %vm608, %v609, %v607
        %v611 = vclz %v610
        %v612 = vsub.s32 %v611, 2
        %vm613 = vcmp.gt.s32.totalorder 0, %v612
        %v614 = vsel %vm613, 0, %v612
        %v615 = vsub.s32 32, %v614
        %v616 = vshll.u32 %v607, %v614
        %v617 = vshrl.u32 %v599, %v615
        %v618 = vor.u32 %v616, %v617
        %v619 = vsub.s32 4294967266, %v614
        %v620 = vadd.s32 %v619, 127
        %v621 = vshll.u32 %v620, 23
        %v622 = vor.u32 4788187, %v621
        %v623 = vand.u32 2147483647, %v622
        %v625 = vcvt.s32.f32 %v618
        %v626 = vmul.f32 %v625, %v623
        %v627 = vxor.u32 %v626, 2147483648
        %v628 = vsel %vm545, %v627, %v626
        %v629 = vsub.s32 4, %v605
        %v630 = vsel %vm545, %v629, %v605
        %v631 = vsel %vm544, %v438, %v628
        %v632 = vsel %vm544, 0, %v630
        %v633 = vcosq.f32.pop %v631
        %v634 = vsinq.f32.pop %v631
        %vm635 = vweird.f32 %v438
        %v636 = vand.u32 %v632, 3
        %vm637 = vcmp.lt.s32.totalorder %v636, 2
        %vm638 = vcmp.eq.s32.totalorder %v636, 0
        %v639 = vxor.u32 %v634, 2147483648
        %v640 = vsel %vm638, %v633, %v639
        %vm641 = vcmp.eq.s32.totalorder %v636, 2
        %v642 = vxor.u32 %v633, 2147483648
        %v643 = vsel %vm641, %v642, %v634
        %v644 = vsel %vm637, %v640, %v643
        %v645 = vsel %vm635, nan, %v644
        %v647 = vrot.slane %v645, 1
        %v649 = vmul.f32 %v542, %v647
        %v651 = vrot.slane %v542, 1
        %v653 = vmul.f32 %v542, %v651
        %v654 = vmul.f32 %v649, %v649
        %v655 = vmul.f32 %v653, %v653
        %v656 = vadd.f32 %v654, %v655
        %v657 = vmul.f32 %v645, %v645
        %v658 = vadd.f32 %v656, %v657
        %v659 = vmax.f32 %v658, 1e-24
        %v660 = vrsqrt.pop %v659
        %v661 = vmul.f32 %v649, %v660
        %662 = vst [vmem:[%s259] sm:$0x1] %v661
        %v663 = vmul.f32 %v653, %v660
        %664 = vst [vmem:[%s259 + $0x1] sm:$0x1] %v663
        %v665 = vmul.f32 %v645, %v660
        %666 = vst [vmem:[%s259 + $0x2] sm:$0x1] %v665
        %667 = vst [vmem:[%s259 + $0x1] sm:$0x4] %v438
        %s668 = sand.u32 %s135, 1
        %s669 = scalar_lea.sflag [#allocation4], %s668
        %s670 = sand.u32 %s135, 1
        %s671 = smul.addr %s670, 4
        %s672 = scalar_lea.vmem [#allocation8], %s671
        // Predicated region
        $region49: #{tpu_custom_call.1} parent=35 // pred_check
          %p673 = pneg %p145
        $region50: #{tpu_custom_call.1} parent=35 // pred_check_branch
          %675 = sbr.rel (%p673) target = $region52
        $region51: #{tpu_custom_call.1} parent=35 // pred_region
          %s677 = ssub.s32 64, 64
          %678 = vsyncadd %s669, %s677
          %s679 = smul.addr %s26, 2
          %s680 = sadd.s32 %s27, %s679
          %s681 = smul.addr %s680, 64
          %s682 = scalar_lea.hbm %s4, %s681
          %s684 = sshll.u32 %s672, 4
          %s685 = int_to_ptr.vmem [resolvable:$true] %s684
          %687 = dma.vmem_to_hbm [thread:$0]  %s685, 64, %s682, %s669
        $region52: #{tpu_custom_call.1} parent=35 // pred_fallthru
          _
      $region36: #{tpu_custom_call.1} parent=5 // pred_fallthru
        _
      %p688 = scmp.le.s32.totalorder 2, %s17
      // Predicated region
      $region53: #{tpu_custom_call.1} parent=5 // pred_check
        %p689 = pneg %p688
      $region54: #{tpu_custom_call.1} parent=5 // pred_check_branch
        %691 = sbr.rel (%p689) target = $region56
      $region55: #{tpu_custom_call.1} parent=5 // pred_region
        %s692 = ssub.s32 %s17, 2
        // Predicated region
        $region57: #{tpu_custom_call.1} parent=55 // pred_check
          %p693 = pneg %p151
        $region58: #{tpu_custom_call.1} parent=55 // pred_check_branch
          %695 = sbr.rel (%p693) target = $region60
        $region59: #{tpu_custom_call.1} parent=55 // pred_region
          %s696 = sand.u32 %s136, 1
          %s697 = scalar_lea.sflag [#allocation4], %s696
          %s698 = sand.u32 %s136, 1
          %s699 = smul.addr %s698, 4
          %s700 = scalar_lea.vmem [#allocation8], %s699
          %701 = dma.done %s697, 64
        $region60: #{tpu_custom_call.1} parent=55 // pred_fallthru
          _
      $region56: #{tpu_custom_call.1} parent=5 // pred_fallthru
        _
    $region6: #{tpu_custom_call.1} parent=1 // loop_footer
      %s21 = sadd.s32 1, %s17
    $region7: #{tpu_custom_call.1} parent=1 // loop_footer_branch
      %16 = sbr.rel target = $region3
    $region8: #{tpu_custom_call.1} parent=1 // loop_exit
      _
    %702 = vsyncpa [#allocation3], 1
    %s703 = scalar_lea.sflag [#allocation3], 1
    %704 = vsyncpa %s703, 1
    %705 = vsyncpa [#allocation6], 1
    %706 = vsyncpa [#allocation4], 1
    %s707 = scalar_lea.sflag [#allocation4], 1
    %708 = vsyncpa %s707, 1

</llo_original>
